<compile_context>
chip_gen: v5e
topology: v5e:2x2
jax: 0.10.0
libtpu: 0.0.40
codegen_flags: <defaults>
</compile_context>

<pallas_src>
import jax
import jax.numpy as jnp
from jax.experimental import pallas as pl
from jax.experimental.pallas import tpu as pltpu

_LANE = 128
_SUBLANE = 8                          # f32 sublanes; scaled for packed dtypes
_MAX_LANE_WIDTH = 8192                # cap on copy-slab lane width
_DMA_CHUNK_BYTES = 8 * 1024 * 1024    # per-chunk HBM->HBM DMA size (no VMEM used)
_NUM_DMA_SLOTS = 4                    # outstanding HBM->HBM DMAs


# ---------------------------------------------------------------------------
# Device-derived sizing (VMEM differs: v5e/v6e 128 MiB, v7x 64 MiB).
# ---------------------------------------------------------------------------
def _vmem_capacity_bytes() -> int:
    try:
        cap = getattr(pltpu.get_tpu_info(), "vmem_capacity_bytes", None)
        if cap:
            return int(cap)
    except Exception:
        pass
    return 64 * 1024 * 1024           # conservative default (v7x-sized)


def _vmem_limit_bytes() -> int:
    return min((_vmem_capacity_bytes() * 3) // 4, 96 * 1024 * 1024)


def _target_block_bytes() -> int:
    # BlockSpec path keeps in+out double-buffered => 4 live block buffers;
    # leave headroom under the scoped-VMEM limit.
    return max(4 * 1024 * 1024, min(_vmem_limit_bytes() // 6, 16 * 1024 * 1024))


# ---------------------------------------------------------------------------
# Slab selection: factor the flat element count into a (rows, cols) copy slab.
# ---------------------------------------------------------------------------
def _largest_lane_divisor(total: int) -> int:
    """Largest multiple-of-128 divisor of `total` (<= _MAX_LANE_WIDTH),
    preferring widths that leave at least 8 rows."""
    cap = min(_MAX_LANE_WIDTH,
              max(_LANE, (total // _SUBLANE) // _LANE * _LANE),
              total)
    L = (cap // _LANE) * _LANE
    while L > _LANE and total % L != 0:
        L -= _LANE
    return L


def _choose_slab_cols(total: int):
    """Column width for the copy slab: a divisor of `total`, ideally a
    multiple of 128 (lane-dense).  Returns None if no usable divisor exists."""
    if total % _LANE == 0:
        return _largest_lane_divisor(total)
    cap = min(_MAX_LANE_WIDTH, total)
    for g in range(cap, _LANE - 1, -1):     # last block dim may equal full dim,
        if total % g == 0:                  # so g need not be a multiple of 128
            return g
    return None


# ---------------------------------------------------------------------------
# Primary path: chunked HBM->HBM DMA identity copy (no VMEM staging).
# ---------------------------------------------------------------------------
def _dma_copy_2d(arr, *, chunk_bytes=None, nslots=_NUM_DMA_SLOTS):
    rows, cols = arr.shape
    itemsize = arr.dtype.itemsize
    if chunk_bytes is None:
        chunk_bytes = _DMA_CHUNK_BYTES
    row_bytes = max(cols * itemsize, 1)
    chunk_rows = max(1, min(rows, chunk_bytes // row_bytes))
    n_full = rows // chunk_rows                  # >= 1 (chunk_rows <= rows)
    rem = rows - n_full * chunk_rows
    nslots_eff = max(1, min(nslots, n_full))

    def kernel(x_hbm, o_hbm, sem):
        def chunk_copy(i, slot):
            start = i * chunk_rows
            return pltpu.make_async_copy(
                x_hbm.at[pl.ds(start, chunk_rows), :],
                o_hbm.at[pl.ds(start, chunk_rows), :],
                sem.at[slot],
            )

        n_prime = min(nslots_eff, n_full)
        # Prologue: fill the DMA pipeline (static unroll, <= nslots copies).
        for i in range(n_prime):
            chunk_copy(i, i).start()
        # Steady state: wait for the oldest in-flight chunk, reuse its slot.
        if n_full > n_prime:
            @pl.loop(n_prime, n_full)
            def _(i):
                slot = i % nslots_eff
                chunk_copy(i - nslots_eff, slot).wait()
                chunk_copy(i, slot).start()
        # Drain the remaining in-flight chunks.
        for i in range(max(n_full - n_prime, 0), n_full):
            chunk_copy(i, i % nslots_eff).wait()
        # Remainder rows (all slots idle by now).
        if rem > 0:
            start = n_full * chunk_rows
            tail = pltpu.make_async_copy(
                x_hbm.at[pl.ds(start, rem), :],
                o_hbm.at[pl.ds(start, rem), :],
                sem.at[0],
            )
            tail.start()
            tail.wait()

    return pl.pallas_call(
        kernel,
        out_shape=jax.ShapeDtypeStruct((rows, cols), arr.dtype),
        in_specs=[pl.BlockSpec(memory_space=pl.ANY)],
        out_specs=pl.BlockSpec(memory_space=pl.ANY),
        scratch_shapes=[pltpu.SemaphoreType.DMA((nslots_eff,))],
        cost_estimate=pl.CostEstimate(
            flops=0, transcendentals=0,
            bytes_accessed=2 * rows * cols * itemsize),
    )(arr)


# ---------------------------------------------------------------------------
# Fallback path: BlockSpec-pipelined VMEM identity copy.
# ---------------------------------------------------------------------------
def _copy_kernel(x_ref, o_ref):
    o_ref[...] = x_ref[...]


def _sublane_multiple(dtype) -> int:
    itemsize = jnp.dtype(dtype).itemsize
    # f32 -> 8, bf16/fp16 -> 16, int8/fp8 -> 32 (native packed tile heights).
    return _SUBLANE * max(1, 4 // max(itemsize, 1))


def _choose_block(rows, cols, dtype):
    """Lane/sublane-dense (8,128)-legal block of ~_target_block_bytes(); the
    first (parallel) grid axis gets >=2 blocks on large tensors so both v7x
    TensorCores participate."""
    itemsize = jnp.dtype(dtype).itemsize
    target = _target_block_bytes()
    sub = _sublane_multiple(dtype)

    max_cols = max(_LANE, (target // (sub * itemsize)) // _LANE * _LANE)
    bc = cols if cols <= max_cols else max_cols

    br_target = max(1, target // (bc * itemsize))
    if br_target >= rows:
        br = rows                                       # full dim -> legal
        if rows >= 2 * sub and rows * cols * itemsize >= 2 * 1024 * 1024:
            half = -(-((rows + 1) // 2) // sub) * sub   # ceil(rows/2) -> mult of sub
            br = min(half, rows)                        # cdiv(rows, br) == 2
    else:
        br = min(rows, max(sub, (br_target // sub) * sub))
    return br, bc


def _pallas_copy_2d(arr):
    rows, cols = arr.shape
    itemsize = arr.dtype.itemsize
    br, bc = _choose_block(rows, cols, arr.dtype)
    grid = (pl.cdiv(rows, br), pl.cdiv(cols, bc))
    return pl.pallas_call(
        _copy_kernel,
        out_shape=jax.ShapeDtypeStruct((rows, cols), arr.dtype),
        grid_spec=pltpu.PrefetchScalarGridSpec(
            num_scalar_prefetch=0,
            grid=grid,
            in_specs=[pl.BlockSpec((br, bc), lambda i, j: (i, j))],
            out_specs=pl.BlockSpec((br, bc), lambda i, j: (i, j)),
        ),
        compiler_params=pltpu.CompilerParams(
            dimension_semantics=("parallel", "parallel"),
            vmem_limit_bytes=_vmem_limit_bytes(),
        ),
        cost_estimate=pl.CostEstimate(
            flops=0, transcendentals=0,
            bytes_accessed=2 * rows * cols * itemsize),
    )(arr)


# ---------------------------------------------------------------------------
# Public wrapper: PyTorch Flatten semantics.
# ---------------------------------------------------------------------------
def flatten(x: jax.Array, *, materialize: bool = True, use_dma: bool = True,
            dma_chunk_bytes=None) -> jax.Array:
    """PyTorch Flatten: (B, ...) -> (B, prod(...)).

    materialize=False : metadata-only reshape (zero HBM traffic; exact torch
                        .view semantics) -- recommended production default.
    materialize=True  : additionally stream the data into a fresh contiguous
                        buffer.  use_dma=True copies via chunked HBM->HBM DMA
                        (no VMEM staging); use_dma=False uses the BlockSpec-
                        pipelined VMEM copy as a fallback.
    """
    b = x.shape[0]
    f = 1
    for d in x.shape[1:]:
        f *= d

    x2d = x.reshape(b, f)                    # metadata-only, row-major == .view
    if not materialize or b * f == 0:
        return x2d

    total = b * f
    cols = _choose_slab_cols(total)
    slab = x2d.reshape(total // cols, cols) if cols is not None else x2d
    if use_dma:
        out = _dma_copy_2d(slab, chunk_bytes=dma_chunk_bytes)
    else:
        out = _pallas_copy_2d(slab)
    return out.reshape(b, f)                 # metadata-only


if __name__ == "__main__":
    key = jax.random.PRNGKey(0)
    # Small NCHW input consistent with a conv-net feature map.
    B, C, H, W = 2, 4, 16, 16
    x = jax.random.normal(key, (B, C, H, W), dtype=jnp.float32)
    y_ref = x.reshape(B, -1)

    # 1) Primary chunked HBM->HBM DMA copy path.
    y = flatten(x, materialize=True)
    jax.block_until_ready(y)
    assert y.shape == (B, C * H * W), y.shape
    assert y.dtype == x.dtype
    assert bool(jnp.array_equal(y, y_ref))

    # 2) Force the multi-chunk DMA pipeline (prologue / steady loop / drain).
    y2 = flatten(x, materialize=True, dma_chunk_bytes=1024)
    jax.block_until_ready(y2)
    assert bool(jnp.array_equal(y2, y_ref))

    # 3) Exercise the remainder-chunk path.
    y3 = flatten(x, materialize=True, dma_chunk_bytes=3 * 1024)
    jax.block_until_ready(y3)
    assert bool(jnp.array_equal(y3, y_ref))

    # 4) BlockSpec-pipelined VMEM fallback path.
    y4 = flatten(x, materialize=True, use_dma=False)
    jax.block_until_ready(y4)
    assert bool(jnp.array_equal(y4, y_ref))

    # 5) Odd (non-multiple-of-128) flattened size, both paths.
    x_odd = jax.random.normal(key, (2, 3, 7, 5), dtype=jnp.float32)
    ref_odd = x_odd.reshape(2, -1)
    y_odd = flatten(x_odd, materialize=True)
    jax.block_until_ready(y_odd)
    assert bool(jnp.array_equal(y_odd, ref_odd))
    assert bool(jnp.array_equal(flatten(x_odd, materialize=True, use_dma=False),
                                ref_odd))

    # 6) Zero-cost view path (recommended default for Flatten in practice).
    assert bool(jnp.array_equal(flatten(x, materialize=False), y_ref))

    print("KERNEL_OK")
</pallas_src>

<mosaic_0001>
module attributes {stable_mosaic.version = 11 : i64} {
  func.func @kernel(%arg0: memref<8x256xf32, #tpu.memory_space<any>>, %arg1: memref<8x256xf32, #tpu.memory_space<any>>, %arg2: memref<1x!tpu.dma_semaphore, #tpu.memory_space<semaphore_mem>>) attributes {dimension_semantics = [], scalar_prefetch = 0 : i64, scratch_operands = 1 : i64, tpu.core_type = #tpu.core_type<tc>} {
    %c0_i32 = arith.constant 0 : i32
    %c0_i32_0 = arith.constant 0 : i32
    %c0_i32_1 = arith.constant 0 : i32
    %0 = tpu.memref_slice %arg0[%c0_i32_0, %c0_i32_1] : memref<8x256xf32, #tpu.memory_space<any>> -> memref<8x256xf32, #tpu.memory_space<any>>
    %c0_i32_2 = arith.constant 0 : i32
    %c0_i32_3 = arith.constant 0 : i32
    %1 = tpu.memref_slice %arg1[%c0_i32_2, %c0_i32_3] : memref<8x256xf32, #tpu.memory_space<any>> -> memref<8x256xf32, #tpu.memory_space<any>>
    %2 = tpu.memref_slice %arg2[%c0_i32] : memref<1x!tpu.dma_semaphore, #tpu.memory_space<semaphore_mem>> -> memref<1x!tpu.dma_semaphore, #tpu.memory_space<semaphore_mem>>
    %3 = tpu.memref_squeeze %2 : memref<1x!tpu.dma_semaphore, #tpu.memory_space<semaphore_mem>> -> memref<!tpu.dma_semaphore, #tpu.memory_space<semaphore_mem>>
    tpu.enqueue_dma source(%0 : memref<8x256xf32, #tpu.memory_space<any>>) target(%1 : memref<8x256xf32, #tpu.memory_space<any>>) target_semaphore(%3 : memref<!tpu.dma_semaphore, #tpu.memory_space<semaphore_mem>>)
    %c0_i32_4 = arith.constant 0 : i32
    %c0_i32_5 = arith.constant 0 : i32
    %c0_i32_6 = arith.constant 0 : i32
    %4 = tpu.memref_slice %arg0[%c0_i32_5, %c0_i32_6] : memref<8x256xf32, #tpu.memory_space<any>> -> memref<8x256xf32, #tpu.memory_space<any>>
    %c0_i32_7 = arith.constant 0 : i32
    %c0_i32_8 = arith.constant 0 : i32
    %5 = tpu.memref_slice %arg1[%c0_i32_7, %c0_i32_8] : memref<8x256xf32, #tpu.memory_space<any>> -> memref<8x256xf32, #tpu.memory_space<any>>
    %6 = tpu.memref_slice %arg2[%c0_i32_4] : memref<1x!tpu.dma_semaphore, #tpu.memory_space<semaphore_mem>> -> memref<1x!tpu.dma_semaphore, #tpu.memory_space<semaphore_mem>>
    %7 = tpu.memref_squeeze %6 : memref<1x!tpu.dma_semaphore, #tpu.memory_space<semaphore_mem>> -> memref<!tpu.dma_semaphore, #tpu.memory_space<semaphore_mem>>
    tpu.wait_dma2 semaphore(%7 : memref<!tpu.dma_semaphore, #tpu.memory_space<semaphore_mem>>) src(%4 : memref<8x256xf32, #tpu.memory_space<any>>) dst(%5 : memref<8x256xf32, #tpu.memory_space<any>>)
    return
  }
}

</mosaic_0001>

<llo_original>
// kernel: tpu_custom_call.1
$region0: #{tpu_custom_call.1}
  #allocation0 [shape = 'u32[]', space=smem, size = 0x4, offset = 0x4, fixed_abs, tag = 'smem constant byte address 0x4 - core index']
  #allocation1 [shape = 'u32[72,128]{1,0:T(1,128)}', space=vmem, size = 0x9000, scoped, tag = 'internal scratch']
  #allocation2 [shape = 's32[1]{0}', space=sflag, size = 0x4, scoped, tag = 'scratch operand']
  #allocation3 [shape = 's32[]', space=sflag, size = 0x4, offset = 0, fixed_abs, tag = 'sflag constant byte address 0x0 - dummy sync flag']
  #allocation4 [shape = 'u32[0]{0}', space=smem, size = 0, offset = 0, fixed_abs, tag = 'smem constant byte address 0x0 - null']
  %s0 = inlined_call_operand.hbm [shape: f32[8,256], index: 0, kind: input, shape index: {}]
  %s1 = inlined_call_operand.hbm [shape: f32[8,256], index: 1, kind: output, shape index: {}]
  %s2 = sld [smem:[#allocation0]]
  $region2: #{tpu_custom_call.1} parent=0
    _
  %s4 = ssub.s32 1, %s2
  %s5 = scalar_select 0, %s4, %s2
  %s7 = sshll.u32 1, 14
  %s8 = sxor.u32 4294967295, %s7
  %s10 = sshll.u32 %s0, 4
  %s11 = int_to_ptr.hbm [resolvable:$true] %s10
  %s12 = sshll.u32 %s1, 4
  %s13 = int_to_ptr.hbm [resolvable:$true] %s12
  %16 = dma.general %s11, 256, %s13, [#allocation2], [#allocation3], [#allocation4], 0, 0
  %s17 = smul.u32 8, 1
  %s18 = smul.u32 %s17, 2
  %s19 = sshll.u32 %s18, 4
  %20 = dma.done [#allocation2], %s19
  %21 = vsyncmov [#allocation2]
  %s22 = vpop.sfrf %21
  %p23 = scmp.eq.s32.totalorder %s22, 0
  %p24 = pneg %p23
  %26 = shalt.err (%p24)

</llo_original>
